<compile_context>
chip_gen: v5e
topology: v5e:2x2
jax: 0.10.0
libtpu: 0.0.40
codegen_flags: <defaults>
</compile_context>

<pallas_src>
import functools

import jax
import jax.numpy as jnp
from jax import lax
from jax.experimental import pallas as pl
from jax.experimental.pallas import tpu as pltpu


N_TILES = 2  # lane-dense batch tiles; 2 keeps both v7x TensorCores busy.


# ------------------------------------------------------------------------------
# Shared per-tile MLP math (feature-major: activations are (H, TILE_B)).
# ------------------------------------------------------------------------------
def _broadcast_invariants(w1, b1, b2, b3, w4t, b4, tb):
    """Pre-broadcast every loop-invariant (H,1)/(2,1) column to full lane width.

    Hoisted out of the Euler time loop (JAX does not CSE broadcast_in_dim);
    regalloc keeps the slabs in vregs or parks them in VMEM -- either way they
    are not re-broadcast n_steps times on the VPU/XLU.
    """
    H = w1.shape[0]
    shp = (H, tb)
    return (jnp.broadcast_to(w1[:, 0:1], shp),
            jnp.broadcast_to(w1[:, 1:2], shp),
            jnp.broadcast_to(b1, shp),
            jnp.broadcast_to(b2, shp),
            jnp.broadcast_to(b3, shp),
            jnp.broadcast_to(w4t[:, 0:1], shp),
            jnp.broadcast_to(w4t[:, 1:2], shp),
            jnp.broadcast_to(b4[0:1, :], (1, tb)),
            jnp.broadcast_to(b4[1:2, :], (1, tb)))


def _mlp_rhs_rows(y0, y1, w2, w3, inv):
    """One RHS evaluation.

    y0, y1 : (1, TB) rows of the transposed state (batch on the lane axis).
    w2, w3 : (H, H) middle weights (bf16 for the MXU, or fp32).
    inv    : pre-broadcast loop-invariant slabs (see _broadcast_invariants).
    """
    w1c0, w1c1, b1s, b2s, b3s, w4c0, w4c1, b4r0, b4r1 = inv
    # Layer 1 (2 -> H) on the VPU: two broadcast-FMA terms (contraction dim 2).
    h = w1c0 * y0 + w1c1 * y1 + b1s                                    # (H, TB) f32
    h = jnp.maximum(h, 0.0)
    # Layers 2 and 3 (H -> H) on the MXU: bf16 operands, fp32 accumulation.
    h = jnp.dot(w2, h.astype(w2.dtype), preferred_element_type=jnp.float32) + b2s
    h = jnp.maximum(h, 0.0)
    h = jnp.dot(w3, h.astype(w3.dtype), preferred_element_type=jnp.float32) + b3s
    h = jnp.maximum(h, 0.0)
    # Layer 4 (H -> 2) on the VPU/XLU: multiply + sublane reductions, no MXU pass.
    r0 = jnp.sum(w4c0 * h, axis=0, keepdims=True) + b4r0               # (1, TB)
    r1 = jnp.sum(w4c1 * h, axis=0, keepdims=True) + b4r1               # (1, TB)
    return r0, r1


# ------------------------------------------------------------------------------
# Kernel 1: single RHS evaluation  (== ODEFunc.forward)
# ------------------------------------------------------------------------------
def _ode_func_kernel(yT_ref, w1_ref, b1_ref, w2_ref, b2_ref, w3_ref, b3_ref,
                     w4t_ref, b4_ref, oT_ref):
    tb = yT_ref.shape[1]
    inv = _broadcast_invariants(w1_ref[...], b1_ref[...], b2_ref[...],
                                b3_ref[...], w4t_ref[...], b4_ref[...], tb)
    r0, r1 = _mlp_rhs_rows(yT_ref[0:1, :], yT_ref[1:2, :],
                           w2_ref[...], w3_ref[...], inv)
    oT_ref[0:1, :] = r0.astype(oT_ref.dtype)
    oT_ref[1:2, :] = r1.astype(oT_ref.dtype)


# ------------------------------------------------------------------------------
# Kernel 2: fused N-step explicit Euler (time loop inside the kernel; weights and
# hoisted broadcast slabs read/built once per batch tile and reused every step).
# ------------------------------------------------------------------------------
def _euler_kernel(dt_ref, yT_ref, w1_ref, b1_ref, w2_ref, b2_ref, w3_ref, b3_ref,
                  w4t_ref, b4_ref, oT_ref, *, n_steps, unroll):
    tb = yT_ref.shape[1]
    dt = dt_ref[0]                      # SMEM scalar -> no recompile per dt value
    w2 = w2_ref[...]
    w3 = w3_ref[...]
    inv = _broadcast_invariants(w1_ref[...], b1_ref[...], b2_ref[...],
                                b3_ref[...], w4t_ref[...], b4_ref[...], tb)

    def body(_, carry):
        y0, y1 = carry
        r0, r1 = _mlp_rhs_rows(y0, y1, w2, w3, inv)
        return (y0 + dt * r0, y1 + dt * r1)

    y0, y1 = lax.fori_loop(0, n_steps, body,
                           (yT_ref[0:1, :], yT_ref[1:2, :]), unroll=unroll)
    oT_ref[0:1, :] = y0.astype(oT_ref.dtype)
    oT_ref[1:2, :] = y1.astype(oT_ref.dtype)


# ------------------------------------------------------------------------------
# Parameter handling (PyTorch layout: weight (out, in), bias (out,))
# ------------------------------------------------------------------------------
def init_params(key, nhidden):
    """Matches the PyTorch init: weights ~ Normal(0, 0.1), biases = 0."""
    dims = [(nhidden, 2), (nhidden, nhidden), (nhidden, nhidden), (2, nhidden)]
    params = []
    for dout, din in dims:
        key, sub = jax.random.split(key)
        w = 0.1 * jax.random.normal(sub, (dout, din), dtype=jnp.float32)
        b = jnp.zeros((dout,), dtype=jnp.float32)
        params.append((w, b))
    return params


def _prep_params(params, use_bf16=True):
    """Kernel layout: column biases, layer-4 weight transposed, bf16 MXU weights."""
    (w1, b1), (w2, b2), (w3, b3), (w4, b4) = params
    mm_dtype = jnp.bfloat16 if use_bf16 else jnp.float32
    return (w1, b1.reshape(-1, 1),
            w2.astype(mm_dtype), b2.reshape(-1, 1),
            w3.astype(mm_dtype), b3.reshape(-1, 1),
            w4.T, b4.reshape(-1, 1))


def _tile_specs(tb, H):
    yT_spec = pl.BlockSpec((2, tb), lambda i: (0, i))
    # Constant index_map -> weights/biases stay VMEM-resident across the grid.
    w_specs = [
        pl.BlockSpec((H, 2), lambda i: (0, 0)),   # w1
        pl.BlockSpec((H, 1), lambda i: (0, 0)),   # b1
        pl.BlockSpec((H, H), lambda i: (0, 0)),   # w2
        pl.BlockSpec((H, 1), lambda i: (0, 0)),   # b2
        pl.BlockSpec((H, H), lambda i: (0, 0)),   # w3
        pl.BlockSpec((H, 1), lambda i: (0, 0)),   # b3
        pl.BlockSpec((H, 2), lambda i: (0, 0)),   # w4t
        pl.BlockSpec((2, 1), lambda i: (0, 0)),   # b4
    ]
    return yT_spec, w_specs


def _cost(B_pad, n_tiles, H, n_steps=1):
    flops = 2 * B_pad * (2 * H + H * H + H * H + 2 * H) * n_steps
    weight_bytes = 4 * (H * 2 + H + H * H + H + H * H + H + H * 2 + 2)
    bytes_accessed = 4 * (2 * B_pad) * 2 + weight_bytes * n_tiles
    return pl.CostEstimate(flops=flops, transcendentals=0,
                           bytes_accessed=bytes_accessed)


def _pad_transpose(y, n_tiles):
    B = y.shape[0]
    unit = 128 * n_tiles
    B_pad = ((B + unit - 1) // unit) * unit
    yT = jnp.pad(y, ((0, B_pad - B), (0, 0))).T     # (2, B_pad), lane-dense batch
    return yT, B, B_pad


# ------------------------------------------------------------------------------
# Public wrappers
# ------------------------------------------------------------------------------
def ode_func_forward_fm(yT_pad, params, *, n_tiles=N_TILES, use_bf16=True):
    """RHS eval on an already feature-major, lane-padded state (2, B_pad).

    Use this form inside an outer solver loop to keep the state feature-major
    end-to-end (no per-step pad/transpose/slice XLA ops)."""
    H = params[0][0].shape[0]
    B_pad = yT_pad.shape[1]
    assert B_pad % (128 * n_tiles) == 0, "B_pad must be a multiple of 128*n_tiles"
    tb = B_pad // n_tiles
    yT_spec, w_specs = _tile_specs(tb, H)
    return pl.pallas_call(
        _ode_func_kernel,
        out_shape=jax.ShapeDtypeStruct((2, B_pad), jnp.float32),
        grid=(n_tiles,),
        in_specs=[yT_spec] + w_specs,
        out_specs=pl.BlockSpec((2, tb), lambda i: (0, i)),
        compiler_params=pltpu.CompilerParams(dimension_semantics=("parallel",)),
        cost_estimate=_cost(B_pad, n_tiles, H),
    )(yT_pad, *_prep_params(params, use_bf16))


def ode_func_forward(t, y, params, *, n_tiles=N_TILES, use_bf16=True):
    """Equivalent of ODEFunc.forward(t, y): returns net(y); t is unused."""
    del t
    yT, B, _ = _pad_transpose(y, n_tiles)
    outT = ode_func_forward_fm(yT, params, n_tiles=n_tiles, use_bf16=use_bf16)
    return outT[:, :B].T                               # back to (B, 2)


def ode_euler_fused(y, params, dt, n_steps, *, n_tiles=N_TILES, use_bf16=True,
                    unroll=4):
    """N explicit-Euler steps of y' = net(y) fused into a single pallas_call."""
    yT, B, B_pad = _pad_transpose(y, n_tiles)
    H = params[0][0].shape[0]
    tb = B_pad // n_tiles
    yT_spec, w_specs = _tile_specs(tb, H)
    dt_spec = pl.BlockSpec(memory_space=pltpu.MemorySpace.SMEM)
    kernel = functools.partial(_euler_kernel, n_steps=int(n_steps),
                               unroll=max(1, min(int(unroll), int(n_steps))))
    outT = pl.pallas_call(
        kernel,
        out_shape=jax.ShapeDtypeStruct((2, B_pad), jnp.float32),
        grid=(n_tiles,),
        in_specs=[dt_spec, yT_spec] + w_specs,
        out_specs=pl.BlockSpec((2, tb), lambda i: (0, i)),
        compiler_params=pltpu.CompilerParams(dimension_semantics=("parallel",)),
        cost_estimate=_cost(B_pad, n_tiles, H, n_steps=int(n_steps)),
    )(jnp.asarray([dt], dtype=jnp.float32), yT, *_prep_params(params, use_bf16))
    return outT[:, :B].T


# ------------------------------------------------------------------------------
# Plain-JAX references (fp32 end-to-end)
# ------------------------------------------------------------------------------
def ode_func_reference(t, y, params):
    del t
    (w1, b1), (w2, b2), (w3, b3), (w4, b4) = params
    h = jnp.maximum(y @ w1.T + b1, 0.0)
    h = jnp.maximum(h @ w2.T + b2, 0.0)
    h = jnp.maximum(h @ w3.T + b3, 0.0)
    return h @ w4.T + b4


def euler_reference(y, params, dt, n_steps):
    def body(_, yy):
        return yy + dt * ode_func_reference(0.0, yy, params)
    return lax.fori_loop(0, n_steps, body, y)


if __name__ == "__main__":
    NHIDDEN = 32     # args.nhidden
    BATCH = 512      # batched Morris-Lecar (V, n) trajectories

    key = jax.random.PRNGKey(0)
    kp, ky = jax.random.split(key)
    params = init_params(kp, NHIDDEN)
    y = jax.random.normal(ky, (BATCH, 2), dtype=jnp.float32)
    t = jnp.float32(0.0)  # unused by forward; present for ODE-solver signature

    # 1) Single RHS evaluation == ODEFunc.forward  (bf16 MXU, fp32 accumulation)
    out = jax.block_until_ready(ode_func_forward(t, y, params))
    ref = ode_func_reference(t, y, params)
    assert out.shape == (BATCH, 2)
    assert jnp.allclose(out, ref, atol=3e-3, rtol=3e-3), "forward mismatch"

    # 2) Fused multi-step Euler integration (time loop inside one pallas_call)
    DT, NSTEPS = 0.05, 32
    y_final = jax.block_until_ready(ode_euler_fused(y, params, DT, NSTEPS))
    y_final_ref = euler_reference(y, params, DT, NSTEPS)
    assert y_final.shape == (BATCH, 2)
    assert jnp.allclose(y_final, y_final_ref, atol=5e-3, rtol=5e-3), \
        "fused Euler mismatch"

    print("KERNEL_OK")
</pallas_src>

<mosaic_0001>
module attributes {stable_mosaic.version = 11 : i64} {
  func.func @_ode_func_kernel(%arg0: i32, %arg1: memref<2x256xf32, #tpu.memory_space<vmem>>, %arg2: memref<32x2xf32, #tpu.memory_space<vmem>>, %arg3: memref<32x1xf32, #tpu.memory_space<vmem>>, %arg4: memref<32x32xbf16, #tpu.memory_space<vmem>>, %arg5: memref<32x1xf32, #tpu.memory_space<vmem>>, %arg6: memref<32x32xbf16, #tpu.memory_space<vmem>>, %arg7: memref<32x1xf32, #tpu.memory_space<vmem>>, %arg8: memref<32x2xf32, #tpu.memory_space<vmem>>, %arg9: memref<2x1xf32, #tpu.memory_space<vmem>>, %arg10: memref<2x256xf32, #tpu.memory_space<vmem>>) attributes {dimension_semantics = [#tpu.dimension_semantics<parallel>], iteration_bounds = array<i64: 2>, scalar_prefetch = 0 : i64, scratch_operands = 0 : i64, tpu.core_type = #tpu.core_type<tc>, window_params = [{transform_indices = @transform_0, window_bounds = array<i64: 2, 256>}, {pipeline_mode = #tpu.pipeline_mode<synchronous>, transform_indices = @transform_1, window_bounds = array<i64: 32, 2>}, {pipeline_mode = #tpu.pipeline_mode<synchronous>, transform_indices = @transform_2, window_bounds = array<i64: 32, 1>}, {pipeline_mode = #tpu.pipeline_mode<synchronous>, transform_indices = @transform_3, window_bounds = array<i64: 32, 32>}, {pipeline_mode = #tpu.pipeline_mode<synchronous>, transform_indices = @transform_4, window_bounds = array<i64: 32, 1>}, {pipeline_mode = #tpu.pipeline_mode<synchronous>, transform_indices = @transform_5, window_bounds = array<i64: 32, 32>}, {pipeline_mode = #tpu.pipeline_mode<synchronous>, transform_indices = @transform_6, window_bounds = array<i64: 32, 1>}, {pipeline_mode = #tpu.pipeline_mode<synchronous>, transform_indices = @transform_7, window_bounds = array<i64: 32, 2>}, {pipeline_mode = #tpu.pipeline_mode<synchronous>, transform_indices = @transform_8, window_bounds = array<i64: 2, 1>}, {transform_indices = @transform_9, window_bounds = array<i64: 2, 256>}]} {
    %c0 = arith.constant 0 : index
    %c0_0 = arith.constant 0 : index
    %0 = vector.load %arg2[%c0, %c0_0] : memref<32x2xf32, #tpu.memory_space<vmem>>, vector<32x2xf32>
    %c0_1 = arith.constant 0 : index
    %c0_2 = arith.constant 0 : index
    %1 = vector.load %arg3[%c0_1, %c0_2] : memref<32x1xf32, #tpu.memory_space<vmem>>, vector<32x1xf32>
    %c0_3 = arith.constant 0 : index
    %c0_4 = arith.constant 0 : index
    %2 = vector.load %arg5[%c0_3, %c0_4] : memref<32x1xf32, #tpu.memory_space<vmem>>, vector<32x1xf32>
    %c0_5 = arith.constant 0 : index
    %c0_6 = arith.constant 0 : index
    %3 = vector.load %arg7[%c0_5, %c0_6] : memref<32x1xf32, #tpu.memory_space<vmem>>, vector<32x1xf32>
    %c0_7 = arith.constant 0 : index
    %c0_8 = arith.constant 0 : index
    %4 = vector.load %arg8[%c0_7, %c0_8] : memref<32x2xf32, #tpu.memory_space<vmem>>, vector<32x2xf32>
    %c0_9 = arith.constant 0 : index
    %c0_10 = arith.constant 0 : index
    %5 = vector.load %arg9[%c0_9, %c0_10] : memref<2x1xf32, #tpu.memory_space<vmem>>, vector<2x1xf32>
    %6 = vector.extract_strided_slice %0 {offsets = [0, 0], sizes = [32, 1], strides = [1, 1]} : vector<32x2xf32> to vector<32x1xf32>
    %7 = vector.shape_cast %6 : vector<32x1xf32> to vector<32x1xf32>
    %8 = vector.broadcast %7 : vector<32x1xf32> to vector<32x256xf32>
    %9 = vector.extract_strided_slice %0 {offsets = [0, 1], sizes = [32, 1], strides = [1, 1]} : vector<32x2xf32> to vector<32x1xf32>
    %10 = vector.shape_cast %9 : vector<32x1xf32> to vector<32x1xf32>
    %11 = vector.broadcast %10 : vector<32x1xf32> to vector<32x256xf32>
    %12 = vector.shape_cast %1 : vector<32x1xf32> to vector<32x1xf32>
    %13 = vector.broadcast %12 : vector<32x1xf32> to vector<32x256xf32>
    %14 = vector.shape_cast %2 : vector<32x1xf32> to vector<32x1xf32>
    %15 = vector.broadcast %14 : vector<32x1xf32> to vector<32x256xf32>
    %16 = vector.shape_cast %3 : vector<32x1xf32> to vector<32x1xf32>
    %17 = vector.broadcast %16 : vector<32x1xf32> to vector<32x256xf32>
    %18 = vector.extract_strided_slice %4 {offsets = [0, 0], sizes = [32, 1], strides = [1, 1]} : vector<32x2xf32> to vector<32x1xf32>
    %19 = vector.shape_cast %18 : vector<32x1xf32> to vector<32x1xf32>
    %20 = vector.broadcast %19 : vector<32x1xf32> to vector<32x256xf32>
    %21 = vector.extract_strided_slice %4 {offsets = [0, 1], sizes = [32, 1], strides = [1, 1]} : vector<32x2xf32> to vector<32x1xf32>
    %22 = vector.shape_cast %21 : vector<32x1xf32> to vector<32x1xf32>
    %23 = vector.broadcast %22 : vector<32x1xf32> to vector<32x256xf32>
    %24 = vector.extract_strided_slice %5 {offsets = [0, 0], sizes = [1, 1], strides = [1, 1]} : vector<2x1xf32> to vector<1x1xf32>
    %25 = vector.shape_cast %24 : vector<1x1xf32> to vector<1x1xf32>
    %26 = vector.broadcast %25 : vector<1x1xf32> to vector<1x256xf32>
    %27 = vector.extract_strided_slice %5 {offsets = [1, 0], sizes = [1, 1], strides = [1, 1]} : vector<2x1xf32> to vector<1x1xf32>
    %28 = vector.shape_cast %27 : vector<1x1xf32> to vector<1x1xf32>
    %29 = vector.broadcast %28 : vector<1x1xf32> to vector<1x256xf32>
    %c0_11 = arith.constant 0 : index
    %c0_12 = arith.constant 0 : index
    %30 = vector.load %arg1[%c0_11, %c0_12] : memref<2x256xf32, #tpu.memory_space<vmem>>, vector<1x256xf32>
    %c1 = arith.constant 1 : index
    %c0_13 = arith.constant 0 : index
    %31 = vector.load %arg1[%c1, %c0_13] : memref<2x256xf32, #tpu.memory_space<vmem>>, vector<1x256xf32>
    %c0_14 = arith.constant 0 : index
    %c0_15 = arith.constant 0 : index
    %32 = vector.load %arg4[%c0_14, %c0_15] : memref<32x32xbf16, #tpu.memory_space<vmem>>, vector<32x32xbf16>
    %c0_16 = arith.constant 0 : index
    %c0_17 = arith.constant 0 : index
    %33 = vector.load %arg6[%c0_16, %c0_17] : memref<32x32xbf16, #tpu.memory_space<vmem>>, vector<32x32xbf16>
    %34 = vector.broadcast %30 : vector<1x256xf32> to vector<32x256xf32>
    %35 = arith.mulf %8, %34 : vector<32x256xf32>
    %36 = vector.broadcast %31 : vector<1x256xf32> to vector<32x256xf32>
    %37 = arith.mulf %11, %36 : vector<32x256xf32>
    %38 = arith.addf %35, %37 : vector<32x256xf32>
    %39 = arith.addf %38, %13 : vector<32x256xf32>
    %cst = arith.constant 0.000000e+00 : f32
    %40 = vector.broadcast %cst : f32 to vector<32x256xf32>
    %41 = arith.maximumf %39, %40 : vector<32x256xf32>
    %42 = arith.truncf %41 : vector<32x256xf32> to vector<32x256xbf16>
    %cst_18 = arith.constant dense<0.000000e+00> : vector<32x256xf32>
    %43 = tpu.matmul %32, %42, %cst_18 {dimension_numbers = #tpu.dot_dimension_numbers<[1], [0], [0], [1], [0, 0, 1, 1], [], []>} : vector<32x32xbf16>, vector<32x256xbf16>, vector<32x256xf32> -> vector<32x256xf32>
    %44 = arith.addf %43, %15 : vector<32x256xf32>
    %cst_19 = arith.constant 0.000000e+00 : f32
    %45 = vector.broadcast %cst_19 : f32 to vector<32x256xf32>
    %46 = arith.maximumf %44, %45 : vector<32x256xf32>
    %47 = arith.truncf %46 : vector<32x256xf32> to vector<32x256xbf16>
    %cst_20 = arith.constant dense<0.000000e+00> : vector<32x256xf32>
    %48 = tpu.matmul %33, %47, %cst_20 {dimension_numbers = #tpu.dot_dimension_numbers<[1], [0], [0], [1], [0, 0, 1, 1], [], []>} : vector<32x32xbf16>, vector<32x256xbf16>, vector<32x256xf32> -> vector<32x256xf32>
    %49 = arith.addf %48, %17 : vector<32x256xf32>
    %cst_21 = arith.constant 0.000000e+00 : f32
    %50 = vector.broadcast %cst_21 : f32 to vector<32x256xf32>
    %51 = arith.maximumf %49, %50 : vector<32x256xf32>
    %52 = arith.mulf %20, %51 : vector<32x256xf32>
    %cst_22 = arith.constant dense<0.000000e+00> : vector<256xf32>
    %53 = vector.multi_reduction <add>, %52, %cst_22 [0] : vector<32x256xf32> to vector<256xf32>
    %54 = vector.shape_cast %53 : vector<256xf32> to vector<1x256xf32>
    %55 = arith.addf %54, %26 : vector<1x256xf32>
    %56 = arith.mulf %23, %51 : vector<32x256xf32>
    %cst_23 = arith.constant dense<0.000000e+00> : vector<256xf32>
    %57 = vector.multi_reduction <add>, %56, %cst_23 [0] : vector<32x256xf32> to vector<256xf32>
    %58 = vector.shape_cast %57 : vector<256xf32> to vector<1x256xf32>
    %59 = arith.addf %58, %29 : vector<1x256xf32>
    %c0_24 = arith.constant 0 : index
    %c0_25 = arith.constant 0 : index
    %60 = vector.load %arg10[%c0_24, %c0_25] : memref<2x256xf32, #tpu.memory_space<vmem>>, vector<1x256xf32>
    tpu.vector_store %arg10[%c0_24, %c0_25], %55 {strides = array<i32>} : memref<2x256xf32, #tpu.memory_space<vmem>>, vector<1x256xf32>,
    %c1_26 = arith.constant 1 : index
    %c0_27 = arith.constant 0 : index
    %61 = vector.load %arg10[%c1_26, %c0_27] : memref<2x256xf32, #tpu.memory_space<vmem>>, vector<1x256xf32>
    tpu.vector_store %arg10[%c1_26, %c0_27], %59 {strides = array<i32>} : memref<2x256xf32, #tpu.memory_space<vmem>>, vector<1x256xf32>,
    return
  }
  func.func @transform_0(%arg0: i32) -> (i32, i32) {
    %c0_i32 = arith.constant 0 : i32
    %c0_i32_0 = arith.constant 0 : i32
    return %c0_i32, %arg0 : i32, i32
  }
  func.func @transform_1(%arg0: i32) -> (i32, i32) {
    %c0_i32 = arith.constant 0 : i32
    %c0_i32_0 = arith.constant 0 : i32
    %c0_i32_1 = arith.constant 0 : i32
    return %c0_i32, %c0_i32_0 : i32, i32
  }
  func.func @transform_2(%arg0: i32) -> (i32, i32) {
    %c0_i32 = arith.constant 0 : i32
    %c0_i32_0 = arith.constant 0 : i32
    %c0_i32_1 = arith.constant 0 : i32
    return %c0_i32, %c0_i32_0 : i32, i32
  }
  func.func @transform_3(%arg0: i32) -> (i32, i32) {
    %c0_i32 = arith.constant 0 : i32
    %c0_i32_0 = arith.constant 0 : i32
    %c0_i32_1 = arith.constant 0 : i32
    return %c0_i32, %c0_i32_0 : i32, i32
  }
  func.func @transform_4(%arg0: i32) -> (i32, i32) {
    %c0_i32 = arith.constant 0 : i32
    %c0_i32_0 = arith.constant 0 : i32
    %c0_i32_1 = arith.constant 0 : i32
    return %c0_i32, %c0_i32_0 : i32, i32
  }
  func.func @transform_5(%arg0: i32) -> (i32, i32) {
    %c0_i32 = arith.constant 0 : i32
    %c0_i32_0 = arith.constant 0 : i32
    %c0_i32_1 = arith.constant 0 : i32
    return %c0_i32, %c0_i32_0 : i32, i32
  }
  func.func @transform_6(%arg0: i32) -> (i32, i32) {
    %c0_i32 = arith.constant 0 : i32
    %c0_i32_0 = arith.constant 0 : i32
    %c0_i32_1 = arith.constant 0 : i32
    return %c0_i32, %c0_i32_0 : i32, i32
  }
  func.func @transform_7(%arg0: i32) -> (i32, i32) {
    %c0_i32 = arith.constant 0 : i32
    %c0_i32_0 = arith.constant 0 : i32
    %c0_i32_1 = arith.constant 0 : i32
    return %c0_i32, %c0_i32_0 : i32, i32
  }
  func.func @transform_8(%arg0: i32) -> (i32, i32) {
    %c0_i32 = arith.constant 0 : i32
    %c0_i32_0 = arith.constant 0 : i32
    %c0_i32_1 = arith.constant 0 : i32
    return %c0_i32, %c0_i32_0 : i32, i32
  }
  func.func @transform_9(%arg0: i32) -> (i32, i32) {
    %c0_i32 = arith.constant 0 : i32
    %c0_i32_0 = arith.constant 0 : i32
    return %c0_i32, %arg0 : i32, i32
  }
}

</mosaic_0001>

<llo_original>
// kernel: tpu_custom_call.1
$region0: #{tpu_custom_call.1}
  #allocation0 [shape = 'u32[]', space=smem, size = 0x4, offset = 0x4, fixed_abs, tag = 'smem constant byte address 0x4 - core index']
  #allocation1 [shape = 'u32[72,128]{1,0:T(1,128)}', space=vmem, size = 0x9000, scoped, tag = 'internal scratch']
  %s0 = inlined_call_operand.vmem [shape: f32[2,512], index: 0, kind: input, shape index: {}]
  %s1 = inlined_call_operand.vmem [shape: f32[32,2], index: 1, kind: input, shape index: {}]
  %s2 = inlined_call_operand.vmem [shape: f32[32,1], index: 2, kind: input, shape index: {}]
  %s3 = inlined_call_operand.vmem [shape: bf16[32,32], index: 3, kind: input, shape index: {}]
  %s4 = inlined_call_operand.vmem [shape: f32[32,1], index: 4, kind: input, shape index: {}]
  %s5 = inlined_call_operand.vmem [shape: bf16[32,32], index: 5, kind: input, shape index: {}]
  %s6 = inlined_call_operand.vmem [shape: f32[32,1], index: 6, kind: input, shape index: {}]
  %s7 = inlined_call_operand.vmem [shape: f32[32,2], index: 7, kind: input, shape index: {}]
  %s8 = inlined_call_operand.vmem [shape: f32[2,1], index: 8, kind: input, shape index: {}]
  %s9 = inlined_call_operand.hbm [shape: f32[2,512], index: 9, kind: output, shape index: {}]
  %s10 = sld [smem:[#allocation0]]
  $region69: #{tpu_custom_call.1} parent=0
    _
  %s12 = ssub.s32 1, %s10
  %s13 = scalar_select 0, %s12, %s10
  $region1: #{tpu_custom_call.1} parent=0
    #allocation2 [shape = 'u8[4096]{0}', space=vmem, size = 0x1000, scoped, tag = 'output window, operand 0']
    #allocation3 [shape = 's32[2]{0}', space=sflag, size = 0x8, scoped, tag = 'scoped memory for tpu_custom_call.1']
    %14 = vsyncpa [#allocation3], 0
    %s15 = scalar_lea.sflag [#allocation3], 1
    %16 = vsyncpa %s15, 0
    loop: start=0, step=1, limit=4
    $region2: #{tpu_custom_call.1} parent=1 // loop_pre_header
      _
    $region3: #{tpu_custom_call.1} parent=1 // loop_header
      %s18 = sphi 0, %s22
      %p19 = scmp.ge.s32.totalorder %s18, 4
      %s28 = sphi 0, %s30
      %s31 = sphi 0, %s28
      %s32 = sphi 0, %s31
      %s48 = sphi 0, %s32
      %s52 = sphi 0, %s52
      %s54 = sphi 0, %s52
      %s55 = sphi 0, %s54
      %s69 = sphi 0, %s55
      %s73 = sphi 0, %s73
      %s75 = sphi 0, %s73
      %s76 = sphi 0, %s75
      %s90 = sphi 0, %s76
      %s94 = sphi 0, %s94
      %s96 = sphi 0, %s94
      %s97 = sphi 0, %s96
      %s111 = sphi 0, %s97
      %s115 = sphi 0, %s115
      %s117 = sphi 0, %s115
      %s118 = sphi 0, %s117
      %s132 = sphi 0, %s118
      %s136 = sphi 0, %s136
      %s138 = sphi 0, %s136
      %s139 = sphi 0, %s138
      %s153 = sphi 0, %s139
      %s157 = sphi 0, %s157
      %s159 = sphi 0, %s157
      %s160 = sphi 0, %s159
      %s174 = sphi 0, %s160
      %s178 = sphi 0, %s178
      %s180 = sphi 0, %s178
      %s181 = sphi 0, %s180
      %s195 = sphi 0, %s181
      %s199 = sphi 0, %s199
      %s201 = sphi 0, %s199
      %s202 = sphi 0, %s201
      %s216 = sphi 0, %s202
      %s222 = sphi 0, %s224
      %s225 = sphi 0, %s222
      %s226 = sphi 0, %s225
      %s242 = sphi 0, %s226
    $region4: #{tpu_custom_call.1} parent=1 // loop_header_branch
      %21 = sbr.rel (%p19) target = $region8
    $region5: #{tpu_custom_call.1} parent=1 // loop_body
      %s23 = ssub.s32 %s18, 1
      %s24 = ssub.s32 %s18, 2
      %s25 = sadd.s32 %s18, 1
      %s26 = ssub.s32 %s18, %s25
      %p27 = scmp.eq.s32.totalorder %s26, 0
      %s29 = sadd.s32 %s28, 1
      %s30 = scalar_select %p27, %s28, %s29
      %p33 = pneg %p27
      %p34 = scmp.eq.s32.totalorder %s18, 1
      %p35 = por %p33, %p34
      %p36 = scmp.ne.s32.totalorder %s28, %s31
      %p37 = scmp.eq.s32.totalorder %s18, 0
      %p38 = por %p36, %p37
      %p39 = scmp.ne.s32.totalorder %s28, %s31
      %p40 = scmp.eq.s32.totalorder %s23, 1
      %p41 = por %p39, %p40
      %p42 = scmp.ne.s32.totalorder %s31, %s32
      %p43 = scmp.eq.s32.totalorder %s23, 0
      %p44 = por %p42, %p43
      %p45 = scmp.ne.s32.totalorder %s31, %s32
      %p46 = scmp.eq.s32.totalorder %s24, 1
      %p47 = por %p45, %p46
      %p49 = scmp.ne.s32.totalorder %s32, %s48
      %p50 = scmp.eq.s32.totalorder %s24, 0
      %p51 = por %p49, %p50
      %s53 = sadd.s32 %s52, 1
      %p56 = scmp.eq.s32.totalorder %s18, 1
      %p57 = scmp.ne.s32.totalorder %s52, %s54
      %p58 = scmp.eq.s32.totalorder %s18, 0
      %p59 = por %p57, %p58
      %p60 = scmp.ne.s32.totalorder %s52, %s54
      %p61 = scmp.eq.s32.totalorder %s23, 1
      %p62 = por %p60, %p61
      %p63 = scmp.ne.s32.totalorder %s54, %s55
      %p64 = scmp.eq.s32.totalorder %s23, 0
      %p65 = por %p63, %p64
      %p66 = scmp.ne.s32.totalorder %s54, %s55
      %p67 = scmp.eq.s32.totalorder %s24, 1
      %p68 = por %p66, %p67
      %p70 = scmp.ne.s32.totalorder %s55, %s69
      %p71 = scmp.eq.s32.totalorder %s24, 0
      %p72 = por %p70, %p71
      %s74 = sadd.s32 %s73, 1
      %p77 = scmp.eq.s32.totalorder %s18, 1
      %p78 = scmp.ne.s32.totalorder %s73, %s75
      %p79 = scmp.eq.s32.totalorder %s18, 0
      %p80 = por %p78, %p79
      %p81 = scmp.ne.s32.totalorder %s73, %s75
      %p82 = scmp.eq.s32.totalorder %s23, 1
      %p83 = por %p81, %p82
      %p84 = scmp.ne.s32.totalorder %s75, %s76
      %p85 = scmp.eq.s32.totalorder %s23, 0
      %p86 = por %p84, %p85
      %p87 = scmp.ne.s32.totalorder %s75, %s76
      %p88 = scmp.eq.s32.totalorder %s24, 1
      %p89 = por %p87, %p88
      %p91 = scmp.ne.s32.totalorder %s76, %s90
      %p92 = scmp.eq.s32.totalorder %s24, 0
      %p93 = por %p91, %p92
      %s95 = sadd.s32 %s94, 1
      %p98 = scmp.eq.s32.totalorder %s18, 1
      %p99 = scmp.ne.s32.totalorder %s94, %s96
      %p100 = scmp.eq.s32.totalorder %s18, 0
      %p101 = por %p99, %p100
      %p102 = scmp.ne.s32.totalorder %s94, %s96
      %p103 = scmp.eq.s32.totalorder %s23, 1
      %p104 = por %p102, %p103
      %p105 = scmp.ne.s32.totalorder %s96, %s97
      %p106 = scmp.eq.s32.totalorder %s23, 0
      %p107 = por %p105, %p106
      %p108 = scmp.ne.s32.totalorder %s96, %s97
      %p109 = scmp.eq.s32.totalorder %s24, 1
      %p110 = por %p108, %p109
      %p112 = scmp.ne.s32.totalorder %s97, %s111
      %p113 = scmp.eq.s32.totalorder %s24, 0
      %p114 = por %p112, %p113
      %s116 = sadd.s32 %s115, 1
      %p119 = scmp.eq.s32.totalorder %s18, 1
      %p120 = scmp.ne.s32.totalorder %s115, %s117
      %p121 = scmp.eq.s32.totalorder %s18, 0
      %p122 = por %p120, %p121
      %p123 = scmp.ne.s32.totalorder %s115, %s117
      %p124 = scmp.eq.s32.totalorder %s23, 1
      %p125 = por %p123, %p124
      %p126 = scmp.ne.s32.totalorder %s117, %s118
      %p127 = scmp.eq.s32.totalorder %s23, 0
      %p128 = por %p126, %p127
      %p129 = scmp.ne.s32.totalorder %s117, %s118
      %p130 = scmp.eq.s32.totalorder %s24, 1
      %p131 = por %p129, %p130
      %p133 = scmp.ne.s32.totalorder %s118, %s132
      %p134 = scmp.eq.s32.totalorder %s24, 0
      %p135 = por %p133, %p134
      %s137 = sadd.s32 %s136, 1
      %p140 = scmp.eq.s32.totalorder %s18, 1
      %p141 = scmp.ne.s32.totalorder %s136, %s138
      %p142 = scmp.eq.s32.totalorder %s18, 0
      %p143 = por %p141, %p142
      %p144 = scmp.ne.s32.totalorder %s136, %s138
      %p145 = scmp.eq.s32.totalorder %s23, 1
      %p146 = por %p144, %p145
      %p147 = scmp.ne.s32.totalorder %s138, %s139
      %p148 = scmp.eq.s32.totalorder %s23, 0
      %p149 = por %p147, %p148
      %p150 = scmp.ne.s32.totalorder %s138, %s139
      %p151 = scmp.eq.s32.totalorder %s24, 1
      %p152 = por %p150, %p151
      %p154 = scmp.ne.s32.totalorder %s139, %s153
      %p155 = scmp.eq.s32.totalorder %s24, 0
      %p156 = por %p154, %p155
      %s158 = sadd.s32 %s157, 1
      %p161 = scmp.eq.s32.totalorder %s18, 1
      %p162 = scmp.ne.s32.totalorder %s157, %s159
      %p163 = scmp.eq.s32.totalorder %s18, 0
      %p164 = por %p162, %p163
      %p165 = scmp.ne.s32.totalorder %s157, %s159
      %p166 = scmp.eq.s32.totalorder %s23, 1
      %p167 = por %p165, %p166
      %p168 = scmp.ne.s32.totalorder %s159, %s160
      %p169 = scmp.eq.s32.totalorder %s23, 0
      %p170 = por %p168, %p169
      %p171 = scmp.ne.s32.totalorder %s159, %s160
      %p172 = scmp.eq.s32.totalorder %s24, 1
      %p173 = por %p171, %p172
      %p175 = scmp.ne.s32.totalorder %s160, %s174
      %p176 = scmp.eq.s32.totalorder %s24, 0
      %p177 = por %p175, %p176
      %s179 = sadd.s32 %s178, 1
      %p182 = scmp.eq.s32.totalorder %s18, 1
      %p183 = scmp.ne.s32.totalorder %s178, %s180
      %p184 = scmp.eq.s32.totalorder %s18, 0
      %p185 = por %p183, %p184
      %p186 = scmp.ne.s32.totalorder %s178, %s180
      %p187 = scmp.eq.s32.totalorder %s23, 1
      %p188 = por %p186, %p187
      %p189 = scmp.ne.s32.totalorder %s180, %s181
      %p190 = scmp.eq.s32.totalorder %s23, 0
      %p191 = por %p189, %p190
      %p192 = scmp.ne.s32.totalorder %s180, %s181
      %p193 = scmp.eq.s32.totalorder %s24, 1
      %p194 = por %p192, %p193
      %p196 = scmp.ne.s32.totalorder %s181, %s195
      %p197 = scmp.eq.s32.totalorder %s24, 0
      %p198 = por %p196, %p197
      %s200 = sadd.s32 %s199, 1
      %p203 = scmp.eq.s32.totalorder %s18, 1
      %p204 = scmp.ne.s32.totalorder %s199, %s201
      %p205 = scmp.eq.s32.totalorder %s18, 0
      %p206 = por %p204, %p205
      %p207 = scmp.ne.s32.totalorder %s199, %s201
      %p208 = scmp.eq.s32.totalorder %s23, 1
      %p209 = por %p207, %p208
      %p210 = scmp.ne.s32.totalorder %s201, %s202
      %p211 = scmp.eq.s32.totalorder %s23, 0
      %p212 = por %p210, %p211
      %p213 = scmp.ne.s32.totalorder %s201, %s202
      %p214 = scmp.eq.s32.totalorder %s24, 1
      %p215 = por %p213, %p214
      %p217 = scmp.ne.s32.totalorder %s202, %s216
      %p218 = scmp.eq.s32.totalorder %s24, 0
      %p219 = por %p217, %p218
      %s220 = ssub.s32 %s18, %s25
      %p221 = scmp.eq.s32.totalorder %s220, 0
      %s223 = sadd.s32 %s222, 1
      %s224 = scalar_select %p221, %s222, %s223
      %p227 = pneg %p221
      %p228 = scmp.eq.s32.totalorder %s18, 1
      %p229 = por %p227, %p228
      %p230 = scmp.ne.s32.totalorder %s222, %s225
      %p231 = scmp.eq.s32.totalorder %s18, 0
      %p232 = por %p230, %p231
      %p233 = scmp.ne.s32.totalorder %s222, %s225
      %p234 = scmp.eq.s32.totalorder %s23, 1
      %p235 = por %p233, %p234
      %p236 = scmp.ne.s32.totalorder %s225, %s226
      %p237 = scmp.eq.s32.totalorder %s23, 0
      %p238 = por %p236, %p237
      %p239 = scmp.ne.s32.totalorder %s225, %s226
      %p240 = scmp.eq.s32.totalorder %s24, 1
      %p241 = por %p239, %p240
      %p243 = scmp.ne.s32.totalorder %s226, %s242
      %p244 = scmp.eq.s32.totalorder %s24, 0
      %p245 = por %p243, %p244
      %p246 = scmp.le.s32.totalorder 1, %s18
      %p247 = scmp.lt.s32.totalorder %s18, 3
      %p248 = pnand %p246, %p247
      %p249 = pneg %p248
      // Predicated region
      $region9: #{tpu_custom_call.1} parent=5 // pred_check
        _
      $region10: #{tpu_custom_call.1} parent=5 // pred_check_branch
        %251 = sbr.rel (%p248) target = $region12
      $region11: #{tpu_custom_call.1} parent=5 // pred_region
        %s252 = ssub.s32 %s18, 1
        // Predicated region
        $region13: #{tpu_custom_call.1} parent=11 // pred_check
          %p253 = pneg %p65
        $region14: #{tpu_custom_call.1} parent=11 // pred_check_branch
          %255 = sbr.rel (%p253) target = $region16
        $region15: #{tpu_custom_call.1} parent=11 // pred_region
          _
        $region16: #{tpu_custom_call.1} parent=11 // pred_fallthru
          _
        // Predicated region
        $region17: #{tpu_custom_call.1} parent=11 // pred_check
          %p256 = pneg %p86
        $region18: #{tpu_custom_call.1} parent=11 // pred_check_branch
          %258 = sbr.rel (%p256) target = $region20
        $region19: #{tpu_custom_call.1} parent=11 // pred_region
          _
        $region20: #{tpu_custom_call.1} parent=11 // pred_fallthru
          _
        // Predicated region
        $region21: #{tpu_custom_call.1} parent=11 // pred_check
          %p259 = pneg %p107
        $region22: #{tpu_custom_call.1} parent=11 // pred_check_branch
          %261 = sbr.rel (%p259) target = $region24
        $region23: #{tpu_custom_call.1} parent=11 // pred_region
          _
        $region24: #{tpu_custom_call.1} parent=11 // pred_fallthru
          _
        // Predicated region
        $region25: #{tpu_custom_call.1} parent=11 // pred_check
          %p262 = pneg %p128
        $region26: #{tpu_custom_call.1} parent=11 // pred_check_branch
          %264 = sbr.rel (%p262) target = $region28
        $region27: #{tpu_custom_call.1} parent=11 // pred_region
          _
        $region28: #{tpu_custom_call.1} parent=11 // pred_fallthru
          _
        // Predicated region
        $region29: #{tpu_custom_call.1} parent=11 // pred_check
          %p265 = pneg %p149
        $region30: #{tpu_custom_call.1} parent=11 // pred_check_branch
          %267 = sbr.rel (%p265) target = $region32
        $region31: #{tpu_custom_call.1} parent=11 // pred_region
          _
        $region32: #{tpu_custom_call.1} parent=11 // pred_fallthru
          _
        // Predicated region
        $region33: #{tpu_custom_call.1} parent=11 // pred_check
          %p268 = pneg %p170
        $region34: #{tpu_custom_call.1} parent=11 // pred_check_branch
          %270 = sbr.rel (%p268) target = $region36
        $region35: #{tpu_custom_call.1} parent=11 // pred_region
          _
        $region36: #{tpu_custom_call.1} parent=11 // pred_fallthru
          _
        // Predicated region
        $region37: #{tpu_custom_call.1} parent=11 // pred_check
          %p271 = pneg %p191
        $region38: #{tpu_custom_call.1} parent=11 // pred_check_branch
          %273 = sbr.rel (%p271) target = $region40
        $region39: #{tpu_custom_call.1} parent=11 // pred_region
          _
        $region40: #{tpu_custom_call.1} parent=11 // pred_fallthru
          _
        // Predicated region
        $region41: #{tpu_custom_call.1} parent=11 // pred_check
          %p274 = pneg %p212
        $region42: #{tpu_custom_call.1} parent=11 // pred_check_branch
          %276 = sbr.rel (%p274) target = $region44
        $region43: #{tpu_custom_call.1} parent=11 // pred_region
          _
        $region44: #{tpu_custom_call.1} parent=11 // pred_fallthru
          _
      $region12: #{tpu_custom_call.1} parent=5 // pred_fallthru
        _
      %p277 = scmp.lt.s32.totalorder %s18, 2
      // Predicated region
      $region45: #{tpu_custom_call.1} parent=5 // pred_check
        %p278 = pneg %p277
      $region46: #{tpu_custom_call.1} parent=5 // pred_check_branch
        %280 = sbr.rel (%p278) target = $region48
      $region47: #{tpu_custom_call.1} parent=5 // pred_region
        // Predicated region
        $region49: #{tpu_custom_call.1} parent=47 // pred_check
          %p281 = pneg %p38
        $region50: #{tpu_custom_call.1} parent=47 // pred_check_branch
          %283 = sbr.rel (%p281) target = $region52
        $region51: #{tpu_custom_call.1} parent=47 // pred_region
          %s284 = smul.u32 2, %s18
          %p285 = scmp.lt.s32.totalorder %s284, 3
          %s286 = scalar_select %p285, %s284, 3
          %s287 = smul.addr %s286, 2
          %s288 = scalar_lea.vmem %s0, %s287
          %s289 = smul.u32 2, %s18
        $region52: #{tpu_custom_call.1} parent=47 // pred_fallthru
          _
      $region48: #{tpu_custom_call.1} parent=5 // pred_fallthru
        _
      %p290 = scmp.le.s32.totalorder 1, %s18
      %p291 = scmp.lt.s32.totalorder %s18, 3
      %p292 = pnand %p290, %p291
      %p293 = pneg %p292
      // Predicated region
      $region53: #{tpu_custom_call.1} parent=5 // pred_check
        _
      $region54: #{tpu_custom_call.1} parent=5 // pred_check_branch
        %295 = sbr.rel (%p292) target = $region56
      $region55: #{tpu_custom_call.1} parent=5 // pred_region
        %s296 = ssub.s32 %s18, 1
        %s297 = smul.u32 2, %s23
        %p298 = scmp.lt.s32.totalorder %s297, 3
        %s299 = scalar_select %p298, %s297, 3
        %s300 = smul.addr %s299, 2
        %s301 = scalar_lea.vmem %s0, %s300
        %p302 = pneg %p44
        %p303 = pneg %p41
        %p304 = pneg %p65
        %p305 = pneg %p62
        %p306 = pneg %p86
        %p307 = pneg %p83
        %p308 = pneg %p107
        %p309 = pneg %p104
        %p310 = pneg %p128
        %p311 = pneg %p125
        %p312 = pneg %p149
        %p313 = pneg %p146
        %p314 = pneg %p170
        %p315 = pneg %p167
        %p316 = pneg %p191
        %p317 = pneg %p188
        %p318 = pneg %p212
        %p319 = pneg %p209
        %p320 = pneg %p238
        %p321 = pneg %p235
        %s322 = sand.u32 %s225, 1
        %s323 = scalar_lea.sflag [#allocation3], %s322
        %s324 = sand.u32 %s225, 1
        %s325 = smul.addr %s324, 4
        %s326 = scalar_lea.vmem [#allocation2], %s325
        %s327 = smul.u32 2, %s23
        %p328 = scmp.lt.s32.totalorder %s327, 3
        %s329 = scalar_select %p328, %s327, 3
        %s330 = smul.addr %s329, 2
        %s331 = scalar_lea.vmem %s0, %s330
        %s332 = smul.u32 2, %s23
        %s333 = smul.u32 2, %s23
        %v335 = vld [vmem:[%s1] sm:$0xff]
        %v336 = vld [vmem:[%s1 + $0x8] sm:$0xff]
        %v337 = vld [vmem:[%s1 + $0x10] sm:$0xff]
        %v338 = vld [vmem:[%s1 + $0x18] sm:$0xff]
        %v339 = vld [vmem:[%s2] sm:$0xff]
        %v340 = vld [vmem:[%s2 + $0x8] sm:$0xff]
        %v341 = vld [vmem:[%s2 + $0x10] sm:$0xff]
        %v342 = vld [vmem:[%s2 + $0x18] sm:$0xff]
        %v343 = vld [vmem:[%s4] sm:$0xff]
        %v344 = vld [vmem:[%s4 + $0x8] sm:$0xff]
        %v345 = vld [vmem:[%s4 + $0x10] sm:$0xff]
        %v346 = vld [vmem:[%s4 + $0x18] sm:$0xff]
        %v347 = vld [vmem:[%s6] sm:$0xff]
        %v348 = vld [vmem:[%s6 + $0x8] sm:$0xff]
        %v349 = vld [vmem:[%s6 + $0x10] sm:$0xff]
        %v350 = vld [vmem:[%s6 + $0x18] sm:$0xff]
        %v351 = vld [vmem:[%s7] sm:$0xff]
        %v352 = vld [vmem:[%s7 + $0x8] sm:$0xff]
        %v353 = vld [vmem:[%s7 + $0x10] sm:$0xff]
        %v354 = vld [vmem:[%s7 + $0x18] sm:$0xff]
        %v355 = vld [vmem:[%s8] sm:$0x3]
        %357 = vset.pattern.permute.xlu0 0
        %358 = vperm.xlu0 %357, %v335
        %v359 = vpop.permute.xlu0 %358
        %362 = vset.pattern.permute.xlu0 0
        %363 = vperm.xlu0 %362, %v336
        %v364 = vpop.permute.xlu0 %363
        %367 = vset.pattern.permute.xlu0 0
        %368 = vperm.xlu0 %367, %v337
        %v369 = vpop.permute.xlu0 %368
        %372 = vset.pattern.permute.xlu0 0
        %373 = vperm.xlu0 %372, %v338
        %v374 = vpop.permute.xlu0 %373
        %376 = vset.pattern.permute.xlu0 1
        %377 = vperm.xlu0 %376, %v335
        %v378 = vpop.permute.xlu0 %377
        %380 = vset.pattern.permute.xlu0 1
        %381 = vperm.xlu0 %380, %v336
        %v382 = vpop.permute.xlu0 %381
        %384 = vset.pattern.permute.xlu0 1
        %385 = vperm.xlu0 %384, %v337
        %v386 = vpop.permute.xlu0 %385
        %388 = vset.pattern.permute.xlu0 1
        %389 = vperm.xlu0 %388, %v338
        %v390 = vpop.permute.xlu0 %389
        %393 = vset.pattern.permute.xlu0 0
        %394 = vperm.xlu0 %393, %v339
        %v395 = vpop.permute.xlu0 %394
        %398 = vset.pattern.permute.xlu0 0
        %399 = vperm.xlu0 %398, %v340
        %v400 = vpop.permute.xlu0 %399
        %403 = vset.pattern.permute.xlu0 0
        %404 = vperm.xlu0 %403, %v341
        %v405 = vpop.permute.xlu0 %404
        %408 = vset.pattern.permute.xlu0 0
        %409 = vperm.xlu0 %408, %v342
        %v410 = vpop.permute.xlu0 %409
        %413 = vset.pattern.permute.xlu0 0
        %414 = vperm.xlu0 %413, %v343
        %v415 = vpop.permute.xlu0 %414
        %418 = vset.pattern.permute.xlu0 0
        %419 = vperm.xlu0 %418, %v344
        %v420 = vpop.permute.xlu0 %419
        %423 = vset.pattern.permute.xlu0 0
        %424 = vperm.xlu0 %423, %v345
        %v425 = vpop.permute.xlu0 %424
        %428 = vset.pattern.permute.xlu0 0
        %429 = vperm.xlu0 %428, %v346
        %v430 = vpop.permute.xlu0 %429
        %433 = vset.pattern.permute.xlu0 0
        %434 = vperm.xlu0 %433, %v347
        %v435 = vpop.permute.xlu0 %434
        %438 = vset.pattern.permute.xlu0 0
        %439 = vperm.xlu0 %438, %v348
        %v440 = vpop.permute.xlu0 %439
        %443 = vset.pattern.permute.xlu0 0
        %444 = vperm.xlu0 %443, %v349
        %v445 = vpop.permute.xlu0 %444
        %448 = vset.pattern.permute.xlu0 0
        %449 = vperm.xlu0 %448, %v350
        %v450 = vpop.permute.xlu0 %449
        %453 = vset.pattern.permute.xlu0 0
        %454 = vperm.xlu0 %453, %v351
        %v455 = vpop.permute.xlu0 %454
        %458 = vset.pattern.permute.xlu0 0
        %459 = vperm.xlu0 %458, %v352
        %v460 = vpop.permute.xlu0 %459
        %463 = vset.pattern.permute.xlu0 0
        %464 = vperm.xlu0 %463, %v353
        %v465 = vpop.permute.xlu0 %464
        %468 = vset.pattern.permute.xlu0 0
        %469 = vperm.xlu0 %468, %v354
        %v470 = vpop.permute.xlu0 %469
        %472 = vset.pattern.permute.xlu0 1
        %473 = vperm.xlu0 %472, %v351
        %v474 = vpop.permute.xlu0 %473
        %476 = vset.pattern.permute.xlu0 1
        %477 = vperm.xlu0 %476, %v352
        %v478 = vpop.permute.xlu0 %477
        %480 = vset.pattern.permute.xlu0 1
        %481 = vperm.xlu0 %480, %v353
        %v482 = vpop.permute.xlu0 %481
        %484 = vset.pattern.permute.xlu0 1
        %485 = vperm.xlu0 %484, %v354
        %v486 = vpop.permute.xlu0 %485
        %489 = vset.pattern.permute.xlu0 0
        %490 = vperm.xlu0 %489, %v355
        %v491 = vpop.permute.xlu0 %490
        %v493 = vld [vmem:[%s331] ss:$2 sm:$0x3]
        %s494 = scalar_lea.vmem %s331, 1
        %v495 = vld [vmem:[%s494] ss:$2 sm:$0x3]
        %v496 = vld [vmem:[%s3] sm:$0xf]
        %v497 = vld [vmem:[%s3 + $0x4] sm:$0xf]
        %v498 = vld [vmem:[%s3 + $0x8] sm:$0xf]
        %v499 = vld [vmem:[%s3 + $0xc] sm:$0xf]
        %v500 = vld [vmem:[%s5] sm:$0xf]
        %v501 = vld [vmem:[%s5 + $0x4] sm:$0xf]
        %v502 = vld [vmem:[%s5 + $0x8] sm:$0xf]
        %v503 = vld [vmem:[%s5 + $0xc] sm:$0xf]
        %v505 = vperm.slane %v493, 0
        %v506 = vperm.slane %v493, 1
        %v509 = vmul.f32 %v359, %v505
        %v510 = vmul.f32 %v359, %v506
        %v511 = vmul.f32 %v364, %v505
        %v512 = vmul.f32 %v364, %v506
        %v513 = vmul.f32 %v369, %v505
        %v514 = vmul.f32 %v369, %v506
        %v515 = vmul.f32 %v374, %v505
        %v516 = vmul.f32 %v374, %v506
        %v518 = vperm.slane %v495, 0
        %v519 = vperm.slane %v495, 1
        %v522 = vmul.f32 %v378, %v518
        %v523 = vmul.f32 %v378, %v519
        %v524 = vmul.f32 %v382, %v518
        %v525 = vmul.f32 %v382, %v519
        %v526 = vmul.f32 %v386, %v518
        %v527 = vmul.f32 %v386, %v519
        %v528 = vmul.f32 %v390, %v518
        %v529 = vmul.f32 %v390, %v519
        %v530 = vadd.f32 %v509, %v522
        %v531 = vadd.f32 %v510, %v523
        %v532 = vadd.f32 %v511, %v524
        %v533 = vadd.f32 %v512, %v525
        %v534 = vadd.f32 %v513, %v526
        %v535 = vadd.f32 %v514, %v527
        %v536 = vadd.f32 %v515, %v528
        %v537 = vadd.f32 %v516, %v529
        %v538 = vadd.f32 %v530, %v395
        %v539 = vadd.f32 %v531, %v395
        %v540 = vadd.f32 %v532, %v400
        %v541 = vadd.f32 %v533, %v400
        %v542 = vadd.f32 %v534, %v405
        %v543 = vadd.f32 %v535, %v405
        %v544 = vadd.f32 %v536, %v410
        %v545 = vadd.f32 %v537, %v410
        %v546 = vmax.f32 %v538, 0.0
        %v547 = vmax.f32 %v539, 0.0
        %v548 = vmax.f32 %v540, 0.0
        %v549 = vmax.f32 %v541, 0.0
        %v550 = vmax.f32 %v542, 0.0
        %v551 = vmax.f32 %v543, 0.0
        %v552 = vmax.f32 %v544, 0.0
        %v553 = vmax.f32 %v545, 0.0
        %v554 = vpack.c.bf16 %v548, %v546
        %v555 = vpack.c.bf16 %v549, %v547
        %v556 = vpack.c.bf16 %v552, %v550
        %v557 = vpack.c.bf16 %v553, %v551
        %v562 = vunpack.c.l.b16 %v496
        %v563 = vunpack.c.l.b16 %v497
        %v564 = vunpack.c.l.b16 %v498
        %v565 = vunpack.c.l.b16 %v499
        %v566 = vpack.c.b16 %v563, %v562
        %v567 = vpack.c.b16 %v565, %v564
        %vm568 = vcmask 261120
        %v570 = vsel %vm568, %v566, 0
        %v573 = vsel %vm568, %v567, 0
        %575 = vmatpush.bf16.msra.mxu0 0
        %576 = vmatpush.bf16.msra.mxu0 0
        %577 = vmatpush.bf16.msra.mxu0 0
        %578 = vmatpush.bf16.msra.mxu0 0
        %579 = vmatpush.bf16.msra.mxu0 0
        %580 = vmatpush.bf16.msra.mxu0 0
        %581 = vmatpush.bf16.msra.mxu0 %v556
        %582 = vmatpush.bf16.msra.mxu0 %v554
        %583 = vmatmul.bf16.gmra.mxu0 %v570
        %v584 = vpop.f32.mrf.mxu0
        %v585 = vadd.f32 %v415, %v584
        %v586 = vpop.f32.mrf.mxu0
        %v587 = vadd.f32 %v420, %v586
        %588 = vmatmul.bf16.gmra.mxu0 %v573
        %v589 = vpop.f32.mrf.mxu0
        %v590 = vadd.f32 %v425, %v589
        %v591 = vpop.f32.mrf.mxu0
        %v592 = vadd.f32 %v430, %v591
        %593 = vdwg.mxu0
        %594 = vmatpush.bf16.msra.mxu0 0
        %595 = vmatpush.bf16.msra.mxu0 0
        %596 = vmatpush.bf16.msra.mxu0 0
        %597 = vmatpush.bf16.msra.mxu0 0
        %598 = vmatpush.bf16.msra.mxu0 0
        %599 = vmatpush.bf16.msra.mxu0 0
        %600 = vmatpush.bf16.msra.mxu0 %v557
        %601 = vmatpush.bf16.msra.mxu0 %v555
        %602 = vmatmul.bf16.gmra.mxu0 %v570
        %v603 = vpop.f32.mrf.mxu0
        %v604 = vadd.f32 %v415, %v603
        %v605 = vpop.f32.mrf.mxu0
        %v606 = vadd.f32 %v420, %v605
        %607 = vmatmul.bf16.gmra.mxu0 %v573
        %v608 = vpop.f32.mrf.mxu0
        %v609 = vadd.f32 %v425, %v608
        %v610 = vpop.f32.mrf.mxu0
        %v611 = vadd.f32 %v430, %v610
        %612 = vdwg.mxu0
        %v613 = vmax.f32 %v585, 0.0
        %v614 = vmax.f32 %v604, 0.0
        %v615 = vmax.f32 %v587, 0.0
        %v616 = vmax.f32 %v606, 0.0
        %v617 = vmax.f32 %v590, 0.0
        %v618 = vmax.f32 %v609, 0.0
        %v619 = vmax.f32 %v592, 0.0
        %v620 = vmax.f32 %v611, 0.0
        %v621 = vpack.c.bf16 %v615, %v613
        %v622 = vpack.c.bf16 %v616, %v614
        %v623 = vpack.c.bf16 %v619, %v617
        %v624 = vpack.c.bf16 %v620, %v618
        %v629 = vunpack.c.l.b16 %v500
        %v630 = vunpack.c.l.b16 %v501
        %v631 = vunpack.c.l.b16 %v502
        %v632 = vunpack.c.l.b16 %v503
        %v633 = vpack.c.b16 %v630, %v629
        %v634 = vpack.c.b16 %v632, %v631
        %v636 = vsel %vm568, %v633, 0
        %v639 = vsel %vm568, %v634, 0
        %641 = vmatpush.bf16.msra.mxu0 0
        %642 = vmatpush.bf16.msra.mxu0 0
        %643 = vmatpush.bf16.msra.mxu0 0
        %644 = vmatpush.bf16.msra.mxu0 0
        %645 = vmatpush.bf16.msra.mxu0 0
        %646 = vmatpush.bf16.msra.mxu0 0
        %647 = vmatpush.bf16.msra.mxu0 %v623
        %648 = vmatpush.bf16.msra.mxu0 %v621
        %649 = vmatmul.bf16.gmra.mxu0 %v636
        %v650 = vpop.f32.mrf.mxu0
        %v651 = vadd.f32 %v435, %v650
        %v652 = vpop.f32.mrf.mxu0
        %v653 = vadd.f32 %v440, %v652
        %654 = vmatmul.bf16.gmra.mxu0 %v639
        %v655 = vpop.f32.mrf.mxu0
        %v656 = vadd.f32 %v445, %v655
        %v657 = vpop.f32.mrf.mxu0
        %v658 = vadd.f32 %v450, %v657
        %659 = vdwg.mxu0
        %660 = vmatpush.bf16.msra.mxu0 0
        %661 = vmatpush.bf16.msra.mxu0 0
        %662 = vmatpush.bf16.msra.mxu0 0
        %663 = vmatpush.bf16.msra.mxu0 0
        %664 = vmatpush.bf16.msra.mxu0 0
        %665 = vmatpush.bf16.msra.mxu0 0
        %666 = vmatpush.bf16.msra.mxu0 %v624
        %667 = vmatpush.bf16.msra.mxu0 %v622
        %668 = vmatmul.bf16.gmra.mxu0 %v636
        %v669 = vpop.f32.mrf.mxu0
        %v670 = vadd.f32 %v435, %v669
        %v671 = vpop.f32.mrf.mxu0
        %v672 = vadd.f32 %v440, %v671
        %673 = vmatmul.bf16.gmra.mxu0 %v639
        %v674 = vpop.f32.mrf.mxu0
        %v675 = vadd.f32 %v445, %v674
        %v676 = vpop.f32.mrf.mxu0
        %v677 = vadd.f32 %v450, %v676
        %678 = vdwg.mxu0
        %v679 = vmax.f32 %v651, 0.0
        %v680 = vmax.f32 %v670, 0.0
        %v681 = vmax.f32 %v653, 0.0
        %v682 = vmax.f32 %v672, 0.0
        %v683 = vmax.f32 %v656, 0.0
        %v684 = vmax.f32 %v675, 0.0
        %v685 = vmax.f32 %v658, 0.0
        %v686 = vmax.f32 %v677, 0.0
        %v687 = vmul.f32 %v455, %v679
        %v688 = vmul.f32 %v455, %v680
        %v689 = vmul.f32 %v460, %v681
        %v690 = vmul.f32 %v460, %v682
        %v691 = vmul.f32 %v465, %v683
        %v692 = vmul.f32 %v465, %v684
        %v693 = vmul.f32 %v470, %v685
        %v694 = vmul.f32 %v470, %v686
        %v695 = vadd.f32 %v687, %v689
        %v696 = vadd.f32 %v695, %v691
        %v697 = vadd.f32 %v696, %v693
        %v698 = vrot.slane %v697, 4
        %v699 = vadd.f32 %v697, %v698
        %v700 = vrot.slane %v699, 2
        %v701 = vadd.f32 %v699, %v700
        %v702 = vrot.slane %v701, 1
        %v703 = vadd.f32 %v701, %v702
        %v704 = vadd.f32 %v688, %v690
        %v705 = vadd.f32 %v704, %v692
        %v706 = vadd.f32 %v705, %v694
        %v707 = vrot.slane %v706, 4
        %v708 = vadd.f32 %v706, %v707
        %v709 = vrot.slane %v708, 2
        %v710 = vadd.f32 %v708, %v709
        %v711 = vrot.slane %v710, 1
        %v712 = vadd.f32 %v710, %v711
        %v713 = vadd.f32 %v703, %v491
        %v714 = vadd.f32 %v712, %v491
        %v715 = vmul.f32 %v474, %v679
        %v716 = vmul.f32 %v474, %v680
        %v717 = vmul.f32 %v478, %v681
        %v718 = vmul.f32 %v478, %v682
        %v719 = vmul.f32 %v482, %v683
        %v720 = vmul.f32 %v482, %v684
        %v721 = vmul.f32 %v486, %v685
        %v722 = vmul.f32 %v486, %v686
        %v723 = vadd.f32 %v715, %v717
        %v724 = vadd.f32 %v723, %v719
        %v725 = vadd.f32 %v724, %v721
        %v726 = vrot.slane %v725, 4
        %v727 = vadd.f32 %v725, %v726
        %v728 = vrot.slane %v727, 2
        %v729 = vadd.f32 %v727, %v728
        %v730 = vrot.slane %v729, 1
        %v731 = vadd.f32 %v729, %v730
        %v732 = vadd.f32 %v716, %v718
        %v733 = vadd.f32 %v732, %v720
        %v734 = vadd.f32 %v733, %v722
        %v735 = vrot.slane %v734, 4
        %v736 = vadd.f32 %v734, %v735
        %v737 = vrot.slane %v736, 2
        %v738 = vadd.f32 %v736, %v737
        %v739 = vrot.slane %v738, 1
        %v740 = vadd.f32 %v738, %v739
        %v741 = vadd.f32 %v731, %v491
        %v742 = vadd.f32 %v740, %v491
        %v745 = vrot.slane %v714, 7
        %vm746 = vcmask 1040384
        %v747 = vsel %vm746, %v713, %v745
        %v749 = vlaneseq
        %vm750 = vcmp.ge.s32.totalorder %v749, 0
        %vm751 = vcmp.lt.s32.totalorder %v749, 256
        %vm752 = vmand %vm750, %vm751
        %753 = vst.msk [vmem:[%s326] ss:$2 sm:$0x3] %vm752, %v747
        %756 = vst [vmem:[#allocation1] sm:$0xff] %v741
        %757 = vst [vmem:[#allocation1 + $0x9] sm:$0xff] %v742
        %s758 = scalar_lea.vmem [#allocation1], 1
        %v759 = vld [vmem:[%s758] ss:$9 sm:$0xff]
        %s761 = scalar_lea.vmem %s326, 1 [#allocation2]
        %762 = vst.msk [vmem:[%s761] ss:$2 sm:$0x3] %vm752, %v759
        %s763 = sand.u32 %s225, 1
        %s764 = scalar_lea.sflag [#allocation3], %s763
        %s765 = sand.u32 %s225, 1
        %s766 = smul.addr %s765, 4
        %s767 = scalar_lea.vmem [#allocation2], %s766
        // Predicated region
        $region57: #{tpu_custom_call.1} parent=55 // pred_check
          %p768 = pneg %p235
        $region58: #{tpu_custom_call.1} parent=55 // pred_check_branch
          %770 = sbr.rel (%p768) target = $region60
        $region59: #{tpu_custom_call.1} parent=55 // pred_region
          %s771 = smul.u32 2, %s23
          %773 = vsyncadd %s764, 0
          %s774 = smul.addr %s771, 2
          %s775 = scalar_lea.hbm %s9, %s774
          %s777 = sshll.u32 %s767, 4
          %s778 = int_to_ptr.vmem [resolvable:$true] %s777
          %s779 = sshll.u32 %s775, 4
          %s780 = int_to_ptr.hbm [resolvable:$true] %s779
          %782 = dma.vmem_to_hbm [thread:$0]  %s778, 64, %s780, %s764
        $region60: #{tpu_custom_call.1} parent=55 // pred_fallthru
          _
      $region56: #{tpu_custom_call.1} parent=5 // pred_fallthru
        _
      %p783 = scmp.le.s32.totalorder 2, %s18
      // Predicated region
      $region61: #{tpu_custom_call.1} parent=5 // pred_check
        %p784 = pneg %p783
      $region62: #{tpu_custom_call.1} parent=5 // pred_check_branch
        %786 = sbr.rel (%p784) target = $region64
      $region63: #{tpu_custom_call.1} parent=5 // pred_region
        %s787 = ssub.s32 %s18, 2
        // Predicated region
        $region65: #{tpu_custom_call.1} parent=63 // pred_check
          %p788 = pneg %p241
        $region66: #{tpu_custom_call.1} parent=63 // pred_check_branch
          %790 = sbr.rel (%p788) target = $region68
        $region67: #{tpu_custom_call.1} parent=63 // pred_region
          %s791 = sand.u32 %s226, 1
          %s792 = scalar_lea.sflag [#allocation3], %s791
          %s793 = sand.u32 %s226, 1
          %s794 = smul.addr %s793, 4
          %s795 = scalar_lea.vmem [#allocation2], %s794
          %797 = dma.done %s792, 64
        $region68: #{tpu_custom_call.1} parent=63 // pred_fallthru
          _
      $region64: #{tpu_custom_call.1} parent=5 // pred_fallthru
        _
    $region6: #{tpu_custom_call.1} parent=1 // loop_footer
      %s22 = sadd.s32 1, %s18
    $region7: #{tpu_custom_call.1} parent=1 // loop_footer_branch
      %17 = sbr.rel target = $region3
    $region8: #{tpu_custom_call.1} parent=1 // loop_exit
      _
    %798 = vsyncpa [#allocation3], 1
    %s799 = scalar_lea.sflag [#allocation3], 1
    %800 = vsyncpa %s799, 1

</llo_original>
